<compile_context>
chip_gen: v7x
topology: tpu7x:2x2x1
jax: 0.10.0
libtpu: 0.0.40
codegen_flags: <defaults>
</compile_context>

<pallas_src>
import jax
import jax.numpy as jnp
from jax.experimental import pallas as pl
from jax.experimental.pallas import tpu as pltpu

_LANE = 128


def _conv1x1_kernel(w_ref, b_ref, x_ref, o_ref):
    # w_ref: SMEM (Cout, Cin)     b_ref: SMEM (Cout,)
    # x_ref: VMEM (1, Cin, s_tile, 128)   o_ref: VMEM (1, Cout, s_tile, 128)
    c_out, c_in = w_ref.shape

    # Load each input channel slab once; each is a dense (s_tile, 128) block.
    xs = [x_ref[0, ci, :, :].astype(jnp.float32) for ci in range(c_in)]

    for co in range(c_out):
        acc = xs[0] * w_ref[co, 0]
        for ci in range(1, c_in):
            acc = acc + xs[ci] * w_ref[co, ci]
        acc = acc + b_ref[co]
        o_ref[0, co, :, :] = acc.astype(o_ref.dtype)


def _spatial_tiling(hw, target_lanes):
    """Pick (padded slab count, slabs per grid step) for the H*W axis."""
    s_total = -(-hw // _LANE)                       # ceil(HW / 128) 128-lane slabs
    if s_total <= 8:
        s_tile = s_total                            # single tile == full dim (legal block)
    else:
        s_tile = min(max(target_lanes // _LANE, 8), (s_total // 8) * 8)
        s_tile = (s_tile // 8) * 8                  # keep second-minor dim a multiple of 8
    s_pad = -(-s_total // s_tile) * s_tile
    return s_pad, s_tile


def conv1x1(x, w, b, *, target_lanes=8192):
    """1x1 conv, NCHW.  x: [B,Cin,H,W], w: [Cout,Cin], b: [Cout] -> [B,Cout,H,W]."""
    B, c_in, H, W = x.shape
    c_out = w.shape[0]
    assert w.shape == (c_out, c_in)
    assert b.shape == (c_out,)

    hw = H * W
    s_pad, s_tile = _spatial_tiling(hw, target_lanes)
    hw_pad = s_pad * _LANE

    # Lane-dense layout: (B, Cin, HW) -> pad -> (B, Cin, s_pad, 128)
    x_flat = x.reshape(B, c_in, hw)
    if hw_pad != hw:
        x_flat = jnp.pad(x_flat, ((0, 0), (0, 0), (0, hw_pad - hw)))
    x4 = x_flat.reshape(B, c_in, s_pad, _LANE)

    grid = (B, s_pad // s_tile)

    out = pl.pallas_call(
        _conv1x1_kernel,
        out_shape=jax.ShapeDtypeStruct((B, c_out, s_pad, _LANE), x.dtype),
        grid_spec=pltpu.PrefetchScalarGridSpec(
            num_scalar_prefetch=0,
            grid=grid,
            in_specs=[
                pl.BlockSpec(memory_space=pltpu.MemorySpace.SMEM),   # weights
                pl.BlockSpec(memory_space=pltpu.MemorySpace.SMEM),   # bias
                pl.BlockSpec((1, c_in, s_tile, _LANE),
                             lambda bi, si: (bi, 0, si, 0)),
            ],
            out_specs=pl.BlockSpec((1, c_out, s_tile, _LANE),
                                   lambda bi, si: (bi, 0, si, 0)),
        ),
        compiler_params=pltpu.CompilerParams(
            dimension_semantics=("parallel", "parallel")),
    )(w, b, x4)

    # Glue: (B, Cout, s_pad, 128) -> (B, Cout, HW) -> (B, Cout, H, W)
    out = out.reshape(B, c_out, hw_pad)[:, :, :hw].reshape(B, c_out, H, W)
    return out


def conv1x1_reference(x, w, b):
    """Pure-JAX reference mirroring nn.Conv2d(kernel_size=1, stride=1)."""
    y = jnp.einsum("oc,bchw->bohw", w, x, precision=jax.lax.Precision.HIGHEST)
    return y + b[None, :, None, None]


if __name__ == "__main__":
    key = jax.random.PRNGKey(0)
    kx, kw, kb, kx2 = jax.random.split(key, 4)

    B, c_in, c_out = 2, 4, 8

    # --- Test 1: small, 128-aligned spatial size (16x16) ---
    H, W = 16, 16
    x = jax.random.normal(kx, (B, c_in, H, W), dtype=jnp.float32)
    w = 0.5 * jax.random.normal(kw, (c_out, c_in), dtype=jnp.float32)
    b = jax.random.normal(kb, (c_out,), dtype=jnp.float32)

    out = conv1x1(x, w, b)
    out = jax.block_until_ready(out)
    ref = conv1x1_reference(x, w, b)
    assert out.shape == (B, c_out, H, W), out.shape
    assert jnp.allclose(out, ref, atol=1e-4, rtol=1e-4), "mismatch vs reference (16x16)"

    # --- Test 2: non-128-multiple spatial size, multi-tile spatial grid (40x40) ---
    H2, W2 = 40, 40
    x2 = jax.random.normal(kx2, (B, c_in, H2, W2), dtype=jnp.float32)
    out2 = conv1x1(x2, w, b, target_lanes=1024)
    out2 = jax.block_until_ready(out2)
    ref2 = conv1x1_reference(x2, w, b)
    assert out2.shape == (B, c_out, H2, W2), out2.shape
    assert jnp.allclose(out2, ref2, atol=1e-4, rtol=1e-4), "mismatch vs reference (40x40)"

    print("KERNEL_OK")
</pallas_src>

<mosaic_0001>
module attributes {stable_mosaic.version = 11 : i64} {
  func.func @_conv1x1_kernel(%arg0: i32, %arg1: i32, %arg2: memref<8x4xf32, #tpu.memory_space<smem>>, %arg3: memref<8xf32, #tpu.memory_space<smem>>, %arg4: memref<1x4x2x128xf32, #tpu.memory_space<vmem>>, %arg5: memref<1x8x2x128xf32, #tpu.memory_space<vmem>>) attributes {dimension_semantics = [#tpu.dimension_semantics<parallel>, #tpu.dimension_semantics<parallel>], iteration_bounds = array<i64: 2, 1>, scalar_prefetch = 0 : i64, scratch_operands = 0 : i64, tpu.core_type = #tpu.core_type<tc>, window_params = [{transform_indices = @transform_0, window_bounds = array<i64: 8, 4>}, {transform_indices = @transform_1, window_bounds = array<i64: 8>}, {transform_indices = @transform_2, window_bounds = array<i64: 1, 4, 2, 128>}, {transform_indices = @transform_3, window_bounds = array<i64: 1, 8, 2, 128>}]} {
    %c0 = arith.constant 0 : index
    %c0_0 = arith.constant 0 : index
    %c0_1 = arith.constant 0 : index
    %c0_2 = arith.constant 0 : index
    %0 = vector.load %arg4[%c0, %c0_0, %c0_1, %c0_2] : memref<1x4x2x128xf32, #tpu.memory_space<vmem>>, vector<1x1x2x128xf32>
    %1 = vector.shape_cast %0 : vector<1x1x2x128xf32> to vector<2x128xf32>
    %c0_3 = arith.constant 0 : index
    %c1 = arith.constant 1 : index
    %c0_4 = arith.constant 0 : index
    %c0_5 = arith.constant 0 : index
    %2 = vector.load %arg4[%c0_3, %c1, %c0_4, %c0_5] : memref<1x4x2x128xf32, #tpu.memory_space<vmem>>, vector<1x1x2x128xf32>
    %3 = vector.shape_cast %2 : vector<1x1x2x128xf32> to vector<2x128xf32>
    %c0_6 = arith.constant 0 : index
    %c2 = arith.constant 2 : index
    %c0_7 = arith.constant 0 : index
    %c0_8 = arith.constant 0 : index
    %4 = vector.load %arg4[%c0_6, %c2, %c0_7, %c0_8] : memref<1x4x2x128xf32, #tpu.memory_space<vmem>>, vector<1x1x2x128xf32>
    %5 = vector.shape_cast %4 : vector<1x1x2x128xf32> to vector<2x128xf32>
    %c0_9 = arith.constant 0 : index
    %c3 = arith.constant 3 : index
    %c0_10 = arith.constant 0 : index
    %c0_11 = arith.constant 0 : index
    %6 = vector.load %arg4[%c0_9, %c3, %c0_10, %c0_11] : memref<1x4x2x128xf32, #tpu.memory_space<vmem>>, vector<1x1x2x128xf32>
    %7 = vector.shape_cast %6 : vector<1x1x2x128xf32> to vector<2x128xf32>
    %c0_12 = arith.constant 0 : index
    %c0_13 = arith.constant 0 : index
    %8 = memref.load %arg2[%c0_12, %c0_13] : memref<8x4xf32, #tpu.memory_space<smem>>
    %9 = vector.broadcast %8 : f32 to vector<2x128xf32>
    %10 = arith.mulf %1, %9 : vector<2x128xf32>
    %c0_14 = arith.constant 0 : index
    %c1_15 = arith.constant 1 : index
    %11 = memref.load %arg2[%c0_14, %c1_15] : memref<8x4xf32, #tpu.memory_space<smem>>
    %12 = vector.broadcast %11 : f32 to vector<2x128xf32>
    %13 = arith.mulf %3, %12 : vector<2x128xf32>
    %14 = arith.addf %10, %13 : vector<2x128xf32>
    %c0_16 = arith.constant 0 : index
    %c2_17 = arith.constant 2 : index
    %15 = memref.load %arg2[%c0_16, %c2_17] : memref<8x4xf32, #tpu.memory_space<smem>>
    %16 = vector.broadcast %15 : f32 to vector<2x128xf32>
    %17 = arith.mulf %5, %16 : vector<2x128xf32>
    %18 = arith.addf %14, %17 : vector<2x128xf32>
    %c0_18 = arith.constant 0 : index
    %c3_19 = arith.constant 3 : index
    %19 = memref.load %arg2[%c0_18, %c3_19] : memref<8x4xf32, #tpu.memory_space<smem>>
    %20 = vector.broadcast %19 : f32 to vector<2x128xf32>
    %21 = arith.mulf %7, %20 : vector<2x128xf32>
    %22 = arith.addf %18, %21 : vector<2x128xf32>
    %c0_20 = arith.constant 0 : index
    %23 = memref.load %arg3[%c0_20] : memref<8xf32, #tpu.memory_space<smem>>
    %24 = vector.broadcast %23 : f32 to vector<2x128xf32>
    %25 = arith.addf %22, %24 : vector<2x128xf32>
    %c0_21 = arith.constant 0 : index
    %c0_22 = arith.constant 0 : index
    %c0_23 = arith.constant 0 : index
    %c0_24 = arith.constant 0 : index
    %26 = vector.load %arg5[%c0_21, %c0_22, %c0_23, %c0_24] : memref<1x8x2x128xf32, #tpu.memory_space<vmem>>, vector<1x1x2x128xf32>
    %27 = vector.shape_cast %26 : vector<1x1x2x128xf32> to vector<2x128xf32>
    %28 = vector.shape_cast %25 : vector<2x128xf32> to vector<1x1x2x128xf32>
    tpu.vector_store %arg5[%c0_21, %c0_22, %c0_23, %c0_24], %28 {strides = array<i32>} : memref<1x8x2x128xf32, #tpu.memory_space<vmem>>, vector<1x1x2x128xf32>,
    %c1_25 = arith.constant 1 : index
    %c0_26 = arith.constant 0 : index
    %29 = memref.load %arg2[%c1_25, %c0_26] : memref<8x4xf32, #tpu.memory_space<smem>>
    %30 = vector.broadcast %29 : f32 to vector<2x128xf32>
    %31 = arith.mulf %1, %30 : vector<2x128xf32>
    %c1_27 = arith.constant 1 : index
    %c1_28 = arith.constant 1 : index
    %32 = memref.load %arg2[%c1_27, %c1_28] : memref<8x4xf32, #tpu.memory_space<smem>>
    %33 = vector.broadcast %32 : f32 to vector<2x128xf32>
    %34 = arith.mulf %3, %33 : vector<2x128xf32>
    %35 = arith.addf %31, %34 : vector<2x128xf32>
    %c1_29 = arith.constant 1 : index
    %c2_30 = arith.constant 2 : index
    %36 = memref.load %arg2[%c1_29, %c2_30] : memref<8x4xf32, #tpu.memory_space<smem>>
    %37 = vector.broadcast %36 : f32 to vector<2x128xf32>
    %38 = arith.mulf %5, %37 : vector<2x128xf32>
    %39 = arith.addf %35, %38 : vector<2x128xf32>
    %c1_31 = arith.constant 1 : index
    %c3_32 = arith.constant 3 : index
    %40 = memref.load %arg2[%c1_31, %c3_32] : memref<8x4xf32, #tpu.memory_space<smem>>
    %41 = vector.broadcast %40 : f32 to vector<2x128xf32>
    %42 = arith.mulf %7, %41 : vector<2x128xf32>
    %43 = arith.addf %39, %42 : vector<2x128xf32>
    %c1_33 = arith.constant 1 : index
    %44 = memref.load %arg3[%c1_33] : memref<8xf32, #tpu.memory_space<smem>>
    %45 = vector.broadcast %44 : f32 to vector<2x128xf32>
    %46 = arith.addf %43, %45 : vector<2x128xf32>
    %c0_34 = arith.constant 0 : index
    %c1_35 = arith.constant 1 : index
    %c0_36 = arith.constant 0 : index
    %c0_37 = arith.constant 0 : index
    %47 = vector.load %arg5[%c0_34, %c1_35, %c0_36, %c0_37] : memref<1x8x2x128xf32, #tpu.memory_space<vmem>>, vector<1x1x2x128xf32>
    %48 = vector.shape_cast %47 : vector<1x1x2x128xf32> to vector<2x128xf32>
    %49 = vector.shape_cast %46 : vector<2x128xf32> to vector<1x1x2x128xf32>
    tpu.vector_store %arg5[%c0_34, %c1_35, %c0_36, %c0_37], %49 {strides = array<i32>} : memref<1x8x2x128xf32, #tpu.memory_space<vmem>>, vector<1x1x2x128xf32>,
    %c2_38 = arith.constant 2 : index
    %c0_39 = arith.constant 0 : index
    %50 = memref.load %arg2[%c2_38, %c0_39] : memref<8x4xf32, #tpu.memory_space<smem>>
    %51 = vector.broadcast %50 : f32 to vector<2x128xf32>
    %52 = arith.mulf %1, %51 : vector<2x128xf32>
    %c2_40 = arith.constant 2 : index
    %c1_41 = arith.constant 1 : index
    %53 = memref.load %arg2[%c2_40, %c1_41] : memref<8x4xf32, #tpu.memory_space<smem>>
    %54 = vector.broadcast %53 : f32 to vector<2x128xf32>
    %55 = arith.mulf %3, %54 : vector<2x128xf32>
    %56 = arith.addf %52, %55 : vector<2x128xf32>
    %c2_42 = arith.constant 2 : index
    %c2_43 = arith.constant 2 : index
    %57 = memref.load %arg2[%c2_42, %c2_43] : memref<8x4xf32, #tpu.memory_space<smem>>
    %58 = vector.broadcast %57 : f32 to vector<2x128xf32>
    %59 = arith.mulf %5, %58 : vector<2x128xf32>
    %60 = arith.addf %56, %59 : vector<2x128xf32>
    %c2_44 = arith.constant 2 : index
    %c3_45 = arith.constant 3 : index
    %61 = memref.load %arg2[%c2_44, %c3_45] : memref<8x4xf32, #tpu.memory_space<smem>>
    %62 = vector.broadcast %61 : f32 to vector<2x128xf32>
    %63 = arith.mulf %7, %62 : vector<2x128xf32>
    %64 = arith.addf %60, %63 : vector<2x128xf32>
    %c2_46 = arith.constant 2 : index
    %65 = memref.load %arg3[%c2_46] : memref<8xf32, #tpu.memory_space<smem>>
    %66 = vector.broadcast %65 : f32 to vector<2x128xf32>
    %67 = arith.addf %64, %66 : vector<2x128xf32>
    %c0_47 = arith.constant 0 : index
    %c2_48 = arith.constant 2 : index
    %c0_49 = arith.constant 0 : index
    %c0_50 = arith.constant 0 : index
    %68 = vector.load %arg5[%c0_47, %c2_48, %c0_49, %c0_50] : memref<1x8x2x128xf32, #tpu.memory_space<vmem>>, vector<1x1x2x128xf32>
    %69 = vector.shape_cast %68 : vector<1x1x2x128xf32> to vector<2x128xf32>
    %70 = vector.shape_cast %67 : vector<2x128xf32> to vector<1x1x2x128xf32>
    tpu.vector_store %arg5[%c0_47, %c2_48, %c0_49, %c0_50], %70 {strides = array<i32>} : memref<1x8x2x128xf32, #tpu.memory_space<vmem>>, vector<1x1x2x128xf32>,
    %c3_51 = arith.constant 3 : index
    %c0_52 = arith.constant 0 : index
    %71 = memref.load %arg2[%c3_51, %c0_52] : memref<8x4xf32, #tpu.memory_space<smem>>
    %72 = vector.broadcast %71 : f32 to vector<2x128xf32>
    %73 = arith.mulf %1, %72 : vector<2x128xf32>
    %c3_53 = arith.constant 3 : index
    %c1_54 = arith.constant 1 : index
    %74 = memref.load %arg2[%c3_53, %c1_54] : memref<8x4xf32, #tpu.memory_space<smem>>
    %75 = vector.broadcast %74 : f32 to vector<2x128xf32>
    %76 = arith.mulf %3, %75 : vector<2x128xf32>
    %77 = arith.addf %73, %76 : vector<2x128xf32>
    %c3_55 = arith.constant 3 : index
    %c2_56 = arith.constant 2 : index
    %78 = memref.load %arg2[%c3_55, %c2_56] : memref<8x4xf32, #tpu.memory_space<smem>>
    %79 = vector.broadcast %78 : f32 to vector<2x128xf32>
    %80 = arith.mulf %5, %79 : vector<2x128xf32>
    %81 = arith.addf %77, %80 : vector<2x128xf32>
    %c3_57 = arith.constant 3 : index
    %c3_58 = arith.constant 3 : index
    %82 = memref.load %arg2[%c3_57, %c3_58] : memref<8x4xf32, #tpu.memory_space<smem>>
    %83 = vector.broadcast %82 : f32 to vector<2x128xf32>
    %84 = arith.mulf %7, %83 : vector<2x128xf32>
    %85 = arith.addf %81, %84 : vector<2x128xf32>
    %c3_59 = arith.constant 3 : index
    %86 = memref.load %arg3[%c3_59] : memref<8xf32, #tpu.memory_space<smem>>
    %87 = vector.broadcast %86 : f32 to vector<2x128xf32>
    %88 = arith.addf %85, %87 : vector<2x128xf32>
    %c0_60 = arith.constant 0 : index
    %c3_61 = arith.constant 3 : index
    %c0_62 = arith.constant 0 : index
    %c0_63 = arith.constant 0 : index
    %89 = vector.load %arg5[%c0_60, %c3_61, %c0_62, %c0_63] : memref<1x8x2x128xf32, #tpu.memory_space<vmem>>, vector<1x1x2x128xf32>
    %90 = vector.shape_cast %89 : vector<1x1x2x128xf32> to vector<2x128xf32>
    %91 = vector.shape_cast %88 : vector<2x128xf32> to vector<1x1x2x128xf32>
    tpu.vector_store %arg5[%c0_60, %c3_61, %c0_62, %c0_63], %91 {strides = array<i32>} : memref<1x8x2x128xf32, #tpu.memory_space<vmem>>, vector<1x1x2x128xf32>,
    %c4 = arith.constant 4 : index
    %c0_64 = arith.constant 0 : index
    %92 = memref.load %arg2[%c4, %c0_64] : memref<8x4xf32, #tpu.memory_space<smem>>
    %93 = vector.broadcast %92 : f32 to vector<2x128xf32>
    %94 = arith.mulf %1, %93 : vector<2x128xf32>
    %c4_65 = arith.constant 4 : index
    %c1_66 = arith.constant 1 : index
    %95 = memref.load %arg2[%c4_65, %c1_66] : memref<8x4xf32, #tpu.memory_space<smem>>
    %96 = vector.broadcast %95 : f32 to vector<2x128xf32>
    %97 = arith.mulf %3, %96 : vector<2x128xf32>
    %98 = arith.addf %94, %97 : vector<2x128xf32>
    %c4_67 = arith.constant 4 : index
    %c2_68 = arith.constant 2 : index
    %99 = memref.load %arg2[%c4_67, %c2_68] : memref<8x4xf32, #tpu.memory_space<smem>>
    %100 = vector.broadcast %99 : f32 to vector<2x128xf32>
    %101 = arith.mulf %5, %100 : vector<2x128xf32>
    %102 = arith.addf %98, %101 : vector<2x128xf32>
    %c4_69 = arith.constant 4 : index
    %c3_70 = arith.constant 3 : index
    %103 = memref.load %arg2[%c4_69, %c3_70] : memref<8x4xf32, #tpu.memory_space<smem>>
    %104 = vector.broadcast %103 : f32 to vector<2x128xf32>
    %105 = arith.mulf %7, %104 : vector<2x128xf32>
    %106 = arith.addf %102, %105 : vector<2x128xf32>
    %c4_71 = arith.constant 4 : index
    %107 = memref.load %arg3[%c4_71] : memref<8xf32, #tpu.memory_space<smem>>
    %108 = vector.broadcast %107 : f32 to vector<2x128xf32>
    %109 = arith.addf %106, %108 : vector<2x128xf32>
    %c0_72 = arith.constant 0 : index
    %c4_73 = arith.constant 4 : index
    %c0_74 = arith.constant 0 : index
    %c0_75 = arith.constant 0 : index
    %110 = vector.load %arg5[%c0_72, %c4_73, %c0_74, %c0_75] : memref<1x8x2x128xf32, #tpu.memory_space<vmem>>, vector<1x1x2x128xf32>
    %111 = vector.shape_cast %110 : vector<1x1x2x128xf32> to vector<2x128xf32>
    %112 = vector.shape_cast %109 : vector<2x128xf32> to vector<1x1x2x128xf32>
    tpu.vector_store %arg5[%c0_72, %c4_73, %c0_74, %c0_75], %112 {strides = array<i32>} : memref<1x8x2x128xf32, #tpu.memory_space<vmem>>, vector<1x1x2x128xf32>,
    %c5 = arith.constant 5 : index
    %c0_76 = arith.constant 0 : index
    %113 = memref.load %arg2[%c5, %c0_76] : memref<8x4xf32, #tpu.memory_space<smem>>
    %114 = vector.broadcast %113 : f32 to vector<2x128xf32>
    %115 = arith.mulf %1, %114 : vector<2x128xf32>
    %c5_77 = arith.constant 5 : index
    %c1_78 = arith.constant 1 : index
    %116 = memref.load %arg2[%c5_77, %c1_78] : memref<8x4xf32, #tpu.memory_space<smem>>
    %117 = vector.broadcast %116 : f32 to vector<2x128xf32>
    %118 = arith.mulf %3, %117 : vector<2x128xf32>
    %119 = arith.addf %115, %118 : vector<2x128xf32>
    %c5_79 = arith.constant 5 : index
    %c2_80 = arith.constant 2 : index
    %120 = memref.load %arg2[%c5_79, %c2_80] : memref<8x4xf32, #tpu.memory_space<smem>>
    %121 = vector.broadcast %120 : f32 to vector<2x128xf32>
    %122 = arith.mulf %5, %121 : vector<2x128xf32>
    %123 = arith.addf %119, %122 : vector<2x128xf32>
    %c5_81 = arith.constant 5 : index
    %c3_82 = arith.constant 3 : index
    %124 = memref.load %arg2[%c5_81, %c3_82] : memref<8x4xf32, #tpu.memory_space<smem>>
    %125 = vector.broadcast %124 : f32 to vector<2x128xf32>
    %126 = arith.mulf %7, %125 : vector<2x128xf32>
    %127 = arith.addf %123, %126 : vector<2x128xf32>
    %c5_83 = arith.constant 5 : index
    %128 = memref.load %arg3[%c5_83] : memref<8xf32, #tpu.memory_space<smem>>
    %129 = vector.broadcast %128 : f32 to vector<2x128xf32>
    %130 = arith.addf %127, %129 : vector<2x128xf32>
    %c0_84 = arith.constant 0 : index
    %c5_85 = arith.constant 5 : index
    %c0_86 = arith.constant 0 : index
    %c0_87 = arith.constant 0 : index
    %131 = vector.load %arg5[%c0_84, %c5_85, %c0_86, %c0_87] : memref<1x8x2x128xf32, #tpu.memory_space<vmem>>, vector<1x1x2x128xf32>
    %132 = vector.shape_cast %131 : vector<1x1x2x128xf32> to vector<2x128xf32>
    %133 = vector.shape_cast %130 : vector<2x128xf32> to vector<1x1x2x128xf32>
    tpu.vector_store %arg5[%c0_84, %c5_85, %c0_86, %c0_87], %133 {strides = array<i32>} : memref<1x8x2x128xf32, #tpu.memory_space<vmem>>, vector<1x1x2x128xf32>,
    %c6 = arith.constant 6 : index
    %c0_88 = arith.constant 0 : index
    %134 = memref.load %arg2[%c6, %c0_88] : memref<8x4xf32, #tpu.memory_space<smem>>
    %135 = vector.broadcast %134 : f32 to vector<2x128xf32>
    %136 = arith.mulf %1, %135 : vector<2x128xf32>
    %c6_89 = arith.constant 6 : index
    %c1_90 = arith.constant 1 : index
    %137 = memref.load %arg2[%c6_89, %c1_90] : memref<8x4xf32, #tpu.memory_space<smem>>
    %138 = vector.broadcast %137 : f32 to vector<2x128xf32>
    %139 = arith.mulf %3, %138 : vector<2x128xf32>
    %140 = arith.addf %136, %139 : vector<2x128xf32>
    %c6_91 = arith.constant 6 : index
    %c2_92 = arith.constant 2 : index
    %141 = memref.load %arg2[%c6_91, %c2_92] : memref<8x4xf32, #tpu.memory_space<smem>>
    %142 = vector.broadcast %141 : f32 to vector<2x128xf32>
    %143 = arith.mulf %5, %142 : vector<2x128xf32>
    %144 = arith.addf %140, %143 : vector<2x128xf32>
    %c6_93 = arith.constant 6 : index
    %c3_94 = arith.constant 3 : index
    %145 = memref.load %arg2[%c6_93, %c3_94] : memref<8x4xf32, #tpu.memory_space<smem>>
    %146 = vector.broadcast %145 : f32 to vector<2x128xf32>
    %147 = arith.mulf %7, %146 : vector<2x128xf32>
    %148 = arith.addf %144, %147 : vector<2x128xf32>
    %c6_95 = arith.constant 6 : index
    %149 = memref.load %arg3[%c6_95] : memref<8xf32, #tpu.memory_space<smem>>
    %150 = vector.broadcast %149 : f32 to vector<2x128xf32>
    %151 = arith.addf %148, %150 : vector<2x128xf32>
    %c0_96 = arith.constant 0 : index
    %c6_97 = arith.constant 6 : index
    %c0_98 = arith.constant 0 : index
    %c0_99 = arith.constant 0 : index
    %152 = vector.load %arg5[%c0_96, %c6_97, %c0_98, %c0_99] : memref<1x8x2x128xf32, #tpu.memory_space<vmem>>, vector<1x1x2x128xf32>
    %153 = vector.shape_cast %152 : vector<1x1x2x128xf32> to vector<2x128xf32>
    %154 = vector.shape_cast %151 : vector<2x128xf32> to vector<1x1x2x128xf32>
    tpu.vector_store %arg5[%c0_96, %c6_97, %c0_98, %c0_99], %154 {strides = array<i32>} : memref<1x8x2x128xf32, #tpu.memory_space<vmem>>, vector<1x1x2x128xf32>,
    %c7 = arith.constant 7 : index
    %c0_100 = arith.constant 0 : index
    %155 = memref.load %arg2[%c7, %c0_100] : memref<8x4xf32, #tpu.memory_space<smem>>
    %156 = vector.broadcast %155 : f32 to vector<2x128xf32>
    %157 = arith.mulf %1, %156 : vector<2x128xf32>
    %c7_101 = arith.constant 7 : index
    %c1_102 = arith.constant 1 : index
    %158 = memref.load %arg2[%c7_101, %c1_102] : memref<8x4xf32, #tpu.memory_space<smem>>
    %159 = vector.broadcast %158 : f32 to vector<2x128xf32>
    %160 = arith.mulf %3, %159 : vector<2x128xf32>
    %161 = arith.addf %157, %160 : vector<2x128xf32>
    %c7_103 = arith.constant 7 : index
    %c2_104 = arith.constant 2 : index
    %162 = memref.load %arg2[%c7_103, %c2_104] : memref<8x4xf32, #tpu.memory_space<smem>>
    %163 = vector.broadcast %162 : f32 to vector<2x128xf32>
    %164 = arith.mulf %5, %163 : vector<2x128xf32>
    %165 = arith.addf %161, %164 : vector<2x128xf32>
    %c7_105 = arith.constant 7 : index
    %c3_106 = arith.constant 3 : index
    %166 = memref.load %arg2[%c7_105, %c3_106] : memref<8x4xf32, #tpu.memory_space<smem>>
    %167 = vector.broadcast %166 : f32 to vector<2x128xf32>
    %168 = arith.mulf %7, %167 : vector<2x128xf32>
    %169 = arith.addf %165, %168 : vector<2x128xf32>
    %c7_107 = arith.constant 7 : index
    %170 = memref.load %arg3[%c7_107] : memref<8xf32, #tpu.memory_space<smem>>
    %171 = vector.broadcast %170 : f32 to vector<2x128xf32>
    %172 = arith.addf %169, %171 : vector<2x128xf32>
    %c0_108 = arith.constant 0 : index
    %c7_109 = arith.constant 7 : index
    %c0_110 = arith.constant 0 : index
    %c0_111 = arith.constant 0 : index
    %173 = vector.load %arg5[%c0_108, %c7_109, %c0_110, %c0_111] : memref<1x8x2x128xf32, #tpu.memory_space<vmem>>, vector<1x1x2x128xf32>
    %174 = vector.shape_cast %173 : vector<1x1x2x128xf32> to vector<2x128xf32>
    %175 = vector.shape_cast %172 : vector<2x128xf32> to vector<1x1x2x128xf32>
    tpu.vector_store %arg5[%c0_108, %c7_109, %c0_110, %c0_111], %175 {strides = array<i32>} : memref<1x8x2x128xf32, #tpu.memory_space<vmem>>, vector<1x1x2x128xf32>,
    return
  }
  func.func @transform_0(%arg0: i32, %arg1: i32) -> (i32, i32) {
    %c0_i32 = arith.constant 0 : i32
    %c0_i32_0 = arith.constant 0 : i32
    %c0_i32_1 = arith.constant 0 : i32
    return %c0_i32, %c0_i32_0 : i32, i32
  }
  func.func @transform_1(%arg0: i32, %arg1: i32) -> i32 {
    %c0_i32 = arith.constant 0 : i32
    %c0_i32_0 = arith.constant 0 : i32
    return %c0_i32 : i32
  }
  func.func @transform_2(%arg0: i32, %arg1: i32) -> (i32, i32, i32, i32) {
    %c0_i32 = arith.constant 0 : i32
    %c0_i32_0 = arith.constant 0 : i32
    %c0_i32_1 = arith.constant 0 : i32
    return %arg0, %c0_i32, %arg1, %c0_i32_0 : i32, i32, i32, i32
  }
  func.func @transform_3(%arg0: i32, %arg1: i32) -> (i32, i32, i32, i32) {
    %c0_i32 = arith.constant 0 : i32
    %c0_i32_0 = arith.constant 0 : i32
    %c0_i32_1 = arith.constant 0 : i32
    return %arg0, %c0_i32, %arg1, %c0_i32_0 : i32, i32, i32, i32
  }
}

</mosaic_0001>

<llo_original>
// kernel: tpu_custom_call.1
$region0: #{tpu_custom_call.1}
  #allocation0 [shape = 'u32[]', space=smem, size = 0x4, offset = 0x4, fixed_abs, tag = 'smem constant byte address 0x4 - core index']
  #allocation1 [shape = 'u32[144,128]{1,0:T(1,128)}', space=vmem, size = 0x12000, scoped, tag = 'internal scratch']
  %s0 = inlined_call_operand.vmem [shape: f32[8,4], index: 0, kind: input, shape index: {}]
  %s1 = inlined_call_operand.vmem [shape: f32[8], index: 1, kind: input, shape index: {}]
  %s2 = inlined_call_operand.vmem [shape: f32[2,4,2,128], index: 2, kind: input, shape index: {}]
  %s3 = inlined_call_operand.hbm [shape: f32[2,8,2,128], index: 3, kind: output, shape index: {}]
  %s4 = sld [smem:[#allocation0]]
  $region53: #{tpu_custom_call.1} parent=0
    _
  %s6 = ssub.s32 1, %s4
  %s7 = scalar_select 0, %s6, %s4
  $region1: #{tpu_custom_call.1} parent=0
    #allocation2 [shape = 'u8[4096]{0}', space=smem, size = 0x1000, scoped, tag = 'input window, operand 0, single buffered']
    #allocation3 [shape = 's32[2]{0}', space=sflag, size = 0x8, scoped, tag = 'scoped memory for tpu_custom_call.1']
    #allocation4 [shape = 's32[2]{0}', space=sflag, size = 0x8, scoped, tag = 'scoped memory for tpu_custom_call.1']
    #allocation5 [shape = 'u8[512]{0}', space=smem, size = 0x200, scoped, tag = 'input window, operand 1, single buffered']
    #allocation6 [shape = 's32[1]{0}', space=sflag, size = 0x4, scoped, tag = 'scoped memory for tpu_custom_call.1']
    #allocation7 [shape = 'u8[16384]{0}', space=vmem, size = 0x4000, scoped, tag = 'output window, operand 0']
    %8 = vsyncpa [#allocation4], 0
    %9 = vsyncpa [#allocation6], 0
    %10 = vsyncpa [#allocation3], 0
    %s11 = scalar_lea.sflag [#allocation3], 1
    %12 = vsyncpa %s11, 0
    loop: start=0, step=1, limit=4
    $region2: #{tpu_custom_call.1} parent=1 // loop_pre_header
      _
    $region3: #{tpu_custom_call.1} parent=1 // loop_header
      %s14 = sphi 0, %s18
      %p15 = scmp.ge.s32.totalorder %s14, 4
      %s21 = sphi 0, %s33
      %s22 = sphi 0, %s29
      %s23 = sphi 0, %s21
      %s24 = sphi 0, %s22
      %s25 = sphi 0, %s23
      %s26 = sphi 0, %s24
      %s34 = sphi 0, %s34
      %s36 = sphi 0, %s34
      %s37 = sphi 0, %s36
      %s51 = sphi 0, %s37
      %s55 = sphi 0, %s55
      %s57 = sphi 0, %s55
      %s58 = sphi 0, %s57
      %s72 = sphi 0, %s58
      %s80 = sphi 0, %s82
      %s83 = sphi 0, %s80
      %s84 = sphi 0, %s83
      %s100 = sphi 0, %s84
      %s108 = sphi 0, %s110
      %s111 = sphi 0, %s108
      %s112 = sphi 0, %s111
      %s128 = sphi 0, %s112
    $region4: #{tpu_custom_call.1} parent=1 // loop_header_branch
      %17 = sbr.rel (%p15) target = $region8
    $region5: #{tpu_custom_call.1} parent=1 // loop_body
      %s19 = ssub.s32 %s14, 1
      %s20 = ssub.s32 %s14, 2
      %s27 = sadd.s32 1, %s22
      %p28 = scmp.ge.s32.totalorder %s27, 1
      %s29 = scalar_select %p28, 0, %s27
      %s30 = sadd.s32 1, %s21
      %s31 = scalar_select %p28, %s30, %s21
      %p32 = scmp.ge.s32.totalorder %s31, 2
      %s33 = scalar_select %p32, 0, %s31
      %s35 = sadd.s32 %s34, 1
      %p38 = scmp.eq.s32.totalorder %s14, 1
      %p39 = scmp.ne.s32.totalorder %s34, %s36
      %p40 = scmp.eq.s32.totalorder %s14, 0
      %p41 = por %p39, %p40
      %p42 = scmp.ne.s32.totalorder %s34, %s36
      %p43 = scmp.eq.s32.totalorder %s19, 1
      %p44 = por %p42, %p43
      %p45 = scmp.ne.s32.totalorder %s36, %s37
      %p46 = scmp.eq.s32.totalorder %s19, 0
      %p47 = por %p45, %p46
      %p48 = scmp.ne.s32.totalorder %s36, %s37
      %p49 = scmp.eq.s32.totalorder %s20, 1
      %p50 = por %p48, %p49
      %p52 = scmp.ne.s32.totalorder %s37, %s51
      %p53 = scmp.eq.s32.totalorder %s20, 0
      %p54 = por %p52, %p53
      %s56 = sadd.s32 %s55, 1
      %p59 = scmp.eq.s32.totalorder %s14, 1
      %p60 = scmp.ne.s32.totalorder %s55, %s57
      %p61 = scmp.eq.s32.totalorder %s14, 0
      %p62 = por %p60, %p61
      %p63 = scmp.ne.s32.totalorder %s55, %s57
      %p64 = scmp.eq.s32.totalorder %s19, 1
      %p65 = por %p63, %p64
      %p66 = scmp.ne.s32.totalorder %s57, %s58
      %p67 = scmp.eq.s32.totalorder %s19, 0
      %p68 = por %p66, %p67
      %p69 = scmp.ne.s32.totalorder %s57, %s58
      %p70 = scmp.eq.s32.totalorder %s20, 1
      %p71 = por %p69, %p70
      %p73 = scmp.ne.s32.totalorder %s58, %s72
      %p74 = scmp.eq.s32.totalorder %s20, 0
      %p75 = por %p73, %p74
      %s76 = ssub.s32 %s21, %s33
      %s77 = ssub.s32 %s22, %s29
      %s78 = sor.u32 %s76, %s77
      %p79 = scmp.eq.s32.totalorder %s78, 0
      %s81 = sadd.s32 %s80, 1
      %s82 = scalar_select %p79, %s80, %s81
      %p85 = pneg %p79
      %p86 = scmp.eq.s32.totalorder %s14, 1
      %p87 = por %p85, %p86
      %p88 = scmp.ne.s32.totalorder %s80, %s83
      %p89 = scmp.eq.s32.totalorder %s14, 0
      %p90 = por %p88, %p89
      %p91 = scmp.ne.s32.totalorder %s80, %s83
      %p92 = scmp.eq.s32.totalorder %s19, 1
      %p93 = por %p91, %p92
      %p94 = scmp.ne.s32.totalorder %s83, %s84
      %p95 = scmp.eq.s32.totalorder %s19, 0
      %p96 = por %p94, %p95
      %p97 = scmp.ne.s32.totalorder %s83, %s84
      %p98 = scmp.eq.s32.totalorder %s20, 1
      %p99 = por %p97, %p98
      %p101 = scmp.ne.s32.totalorder %s84, %s100
      %p102 = scmp.eq.s32.totalorder %s20, 0
      %p103 = por %p101, %p102
      %s104 = ssub.s32 %s21, %s33
      %s105 = ssub.s32 %s22, %s29
      %s106 = sor.u32 %s104, %s105
      %p107 = scmp.eq.s32.totalorder %s106, 0
      %s109 = sadd.s32 %s108, 1
      %s110 = scalar_select %p107, %s108, %s109
      %p113 = pneg %p107
      %p114 = scmp.eq.s32.totalorder %s14, 1
      %p115 = por %p113, %p114
      %p116 = scmp.ne.s32.totalorder %s108, %s111
      %p117 = scmp.eq.s32.totalorder %s14, 0
      %p118 = por %p116, %p117
      %p119 = scmp.ne.s32.totalorder %s108, %s111
      %p120 = scmp.eq.s32.totalorder %s19, 1
      %p121 = por %p119, %p120
      %p122 = scmp.ne.s32.totalorder %s111, %s112
      %p123 = scmp.eq.s32.totalorder %s19, 0
      %p124 = por %p122, %p123
      %p125 = scmp.ne.s32.totalorder %s111, %s112
      %p126 = scmp.eq.s32.totalorder %s20, 1
      %p127 = por %p125, %p126
      %p129 = scmp.ne.s32.totalorder %s112, %s128
      %p130 = scmp.eq.s32.totalorder %s20, 0
      %p131 = por %p129, %p130
      %p132 = scmp.le.s32.totalorder 1, %s14
      %p133 = scmp.lt.s32.totalorder %s14, 3
      %p134 = pnand %p132, %p133
      %p135 = pneg %p134
      // Predicated region
      $region9: #{tpu_custom_call.1} parent=5 // pred_check
        _
      $region10: #{tpu_custom_call.1} parent=5 // pred_check_branch
        %137 = sbr.rel (%p134) target = $region12
      $region11: #{tpu_custom_call.1} parent=5 // pred_region
        %s138 = ssub.s32 %s14, 1
        // Predicated region
        $region13: #{tpu_custom_call.1} parent=11 // pred_check
          %p139 = pneg %p47
        $region14: #{tpu_custom_call.1} parent=11 // pred_check_branch
          %141 = sbr.rel (%p139) target = $region16
        $region15: #{tpu_custom_call.1} parent=11 // pred_region
          %s143 = ssub.s32 128, 128
          %144 = vsyncadd [#allocation4], %s143
          %s146 = sshll.u32 %s0, 4
          %s147 = int_to_ptr.vmem [resolvable:$true] %s146
          %149 = dma.vmem_to_smem %s147, 128, [#allocation2], [#allocation4]
        $region16: #{tpu_custom_call.1} parent=11 // pred_fallthru
          _
        // Predicated region
        $region17: #{tpu_custom_call.1} parent=11 // pred_check
          %p150 = pneg %p68
        $region18: #{tpu_custom_call.1} parent=11 // pred_check_branch
          %152 = sbr.rel (%p150) target = $region20
        $region19: #{tpu_custom_call.1} parent=11 // pred_region
          %s154 = ssub.s32 16, 16
          %155 = vsyncadd [#allocation6], %s154
          %s157 = sshll.u32 %s1, 4
          %s158 = int_to_ptr.vmem [resolvable:$true] %s157
          %160 = dma.vmem_to_smem %s158, 16, [#allocation5], [#allocation6]
        $region20: #{tpu_custom_call.1} parent=11 // pred_fallthru
          _
      $region12: #{tpu_custom_call.1} parent=5 // pred_fallthru
        _
      %p161 = scmp.lt.s32.totalorder %s14, 2
      // Predicated region
      $region21: #{tpu_custom_call.1} parent=5 // pred_check
        %p162 = pneg %p161
      $region22: #{tpu_custom_call.1} parent=5 // pred_check_branch
        %164 = sbr.rel (%p162) target = $region24
      $region23: #{tpu_custom_call.1} parent=5 // pred_region
        // Predicated region
        $region25: #{tpu_custom_call.1} parent=23 // pred_check
          %p165 = pneg %p90
        $region26: #{tpu_custom_call.1} parent=23 // pred_check_branch
          %167 = sbr.rel (%p165) target = $region28
        $region27: #{tpu_custom_call.1} parent=23 // pred_region
          %p168 = scmp.lt.s32.totalorder %s21, 1
          %s169 = scalar_select %p168, %s21, 1
          %p170 = scmp.lt.s32.totalorder %s22, 0
          %s171 = scalar_select %p170, %s22, 0
          %s172 = smul.addr %s169, 4
          %s173 = sadd.s32 %s171, %s172
          %s174 = smul.addr %s173, 2
          %s175 = scalar_lea.vmem %s2, %s174
        $region28: #{tpu_custom_call.1} parent=23 // pred_fallthru
          _
      $region24: #{tpu_custom_call.1} parent=5 // pred_fallthru
        _
      %p176 = scmp.le.s32.totalorder 1, %s14
      %p177 = scmp.lt.s32.totalorder %s14, 3
      %p178 = pnand %p176, %p177
      %p179 = pneg %p178
      // Predicated region
      $region29: #{tpu_custom_call.1} parent=5 // pred_check
        _
      $region30: #{tpu_custom_call.1} parent=5 // pred_check_branch
        %181 = sbr.rel (%p178) target = $region32
      $region31: #{tpu_custom_call.1} parent=5 // pred_region
        %s182 = ssub.s32 %s14, 1
        // Predicated region
        $region33: #{tpu_custom_call.1} parent=31 // pred_check
          %p183 = pneg %p47
        $region34: #{tpu_custom_call.1} parent=31 // pred_check_branch
          %185 = sbr.rel (%p183) target = $region36
        $region35: #{tpu_custom_call.1} parent=31 // pred_region
          %186 = dma.done [#allocation4], 128
        $region36: #{tpu_custom_call.1} parent=31 // pred_fallthru
          _
        // Predicated region
        $region37: #{tpu_custom_call.1} parent=31 // pred_check
          %p187 = pneg %p68
        $region38: #{tpu_custom_call.1} parent=31 // pred_check_branch
          %189 = sbr.rel (%p187) target = $region40
        $region39: #{tpu_custom_call.1} parent=31 // pred_region
          %190 = dma.done [#allocation6], 16
        $region40: #{tpu_custom_call.1} parent=31 // pred_fallthru
          _
        %191 = sfence
        %p192 = pneg %p47
        %p193 = pneg %p44
        %p194 = pneg %p68
        %p195 = pneg %p65
        %p196 = scmp.lt.s32.totalorder %s23, 1
        %s197 = scalar_select %p196, %s23, 1
        %p198 = scmp.lt.s32.totalorder %s24, 0
        %s199 = scalar_select %p198, %s24, 0
        %s200 = smul.addr %s197, 4
        %s201 = sadd.s32 %s199, %s200
        %s202 = smul.addr %s201, 2
        %s203 = scalar_lea.vmem %s2, %s202
        %p204 = pneg %p96
        %p205 = pneg %p93
        %p206 = pneg %p124
        %p207 = pneg %p121
        %s208 = sand.u32 %s111, 1
        %s209 = scalar_lea.sflag [#allocation3], %s208
        %s210 = sand.u32 %s111, 1
        %s211 = smul.addr %s210, 16
        %s212 = scalar_lea.vmem [#allocation7], %s211
        %p213 = scmp.lt.s32.totalorder %s23, 1
        %s214 = scalar_select %p213, %s23, 1
        %p215 = scmp.lt.s32.totalorder %s24, 0
        %s216 = scalar_select %p215, %s24, 0
        %s217 = smul.addr %s214, 4
        %s218 = sadd.s32 %s216, %s217
        %s219 = smul.addr %s218, 2
        %s220 = scalar_lea.vmem %s2, %s219
        %v221 = vld [vmem:[%s220] sm:$0x3]
        %s222 = scalar_lea.vmem %s220, 2
        %v223 = vld [vmem:[%s222] sm:$0x3]
        %s224 = scalar_lea.vmem %s220, 4
        %v225 = vld [vmem:[%s224] sm:$0x3]
        %s226 = scalar_lea.vmem %s220, 6
        %v227 = vld [vmem:[%s226] sm:$0x3]
        %s228 = sld [smem:[#allocation2]]
        %v229 = vstv %s228
        %v230 = vmul.f32 %v221, %v229
        %s231 = sld [smem:[#allocation2 + $0x1]]
        %v232 = vstv %s231
        %v233 = vmul.f32 %v223, %v232
        %v234 = vadd.f32 %v230, %v233
        %s235 = sld [smem:[#allocation2 + $0x2]]
        %v236 = vstv %s235
        %v237 = vmul.f32 %v225, %v236
        %v238 = vadd.f32 %v234, %v237
        %s239 = sld [smem:[#allocation2 + $0x3]]
        %v240 = vstv %s239
        %v241 = vmul.f32 %v227, %v240
        %v242 = vadd.f32 %v238, %v241
        %s243 = sld [smem:[#allocation5]]
        %v244 = vstv %s243
        %v245 = vadd.f32 %v242, %v244
        %246 = vst [vmem:[%s212] sm:$0x3] %v245
        %s247 = sld [smem:[#allocation2 + $0x80]]
        %v248 = vstv %s247
        %v249 = vmul.f32 %v221, %v248
        %s250 = sld [smem:[#allocation2 + $0x81]]
        %v251 = vstv %s250
        %v252 = vmul.f32 %v223, %v251
        %v253 = vadd.f32 %v249, %v252
        %s254 = sld [smem:[#allocation2 + $0x82]]
        %v255 = vstv %s254
        %v256 = vmul.f32 %v225, %v255
        %v257 = vadd.f32 %v253, %v256
        %s258 = sld [smem:[#allocation2 + $0x83]]
        %v259 = vstv %s258
        %v260 = vmul.f32 %v227, %v259
        %v261 = vadd.f32 %v257, %v260
        %s262 = sld [smem:[#allocation5 + $0x1]]
        %v263 = vstv %s262
        %v264 = vadd.f32 %v261, %v263
        %s265 = scalar_lea.vmem %s212, 2 [#allocation7]
        %266 = vst [vmem:[%s265] sm:$0x3] %v264
        %s267 = sld [smem:[#allocation2 + $0x100]]
        %v268 = vstv %s267
        %v269 = vmul.f32 %v221, %v268
        %s270 = sld [smem:[#allocation2 + $0x101]]
        %v271 = vstv %s270
        %v272 = vmul.f32 %v223, %v271
        %v273 = vadd.f32 %v269, %v272
        %s274 = sld [smem:[#allocation2 + $0x102]]
        %v275 = vstv %s274
        %v276 = vmul.f32 %v225, %v275
        %v277 = vadd.f32 %v273, %v276
        %s278 = sld [smem:[#allocation2 + $0x103]]
        %v279 = vstv %s278
        %v280 = vmul.f32 %v227, %v279
        %v281 = vadd.f32 %v277, %v280
        %s282 = sld [smem:[#allocation5 + $0x2]]
        %v283 = vstv %s282
        %v284 = vadd.f32 %v281, %v283
        %s285 = scalar_lea.vmem %s212, 4 [#allocation7]
        %286 = vst [vmem:[%s285] sm:$0x3] %v284
        %s287 = sld [smem:[#allocation2 + $0x180]]
        %v288 = vstv %s287
        %v289 = vmul.f32 %v221, %v288
        %s290 = sld [smem:[#allocation2 + $0x181]]
        %v291 = vstv %s290
        %v292 = vmul.f32 %v223, %v291
        %v293 = vadd.f32 %v289, %v292
        %s294 = sld [smem:[#allocation2 + $0x182]]
        %v295 = vstv %s294
        %v296 = vmul.f32 %v225, %v295
        %v297 = vadd.f32 %v293, %v296
        %s298 = sld [smem:[#allocation2 + $0x183]]
        %v299 = vstv %s298
        %v300 = vmul.f32 %v227, %v299
        %v301 = vadd.f32 %v297, %v300
        %s302 = sld [smem:[#allocation5 + $0x3]]
        %v303 = vstv %s302
        %v304 = vadd.f32 %v301, %v303
        %s305 = scalar_lea.vmem %s212, 6 [#allocation7]
        %306 = vst [vmem:[%s305] sm:$0x3] %v304
        %s307 = sld [smem:[#allocation2 + $0x200]]
        %v308 = vstv %s307
        %v309 = vmul.f32 %v221, %v308
        %s310 = sld [smem:[#allocation2 + $0x201]]
        %v311 = vstv %s310
        %v312 = vmul.f32 %v223, %v311
        %v313 = vadd.f32 %v309, %v312
        %s314 = sld [smem:[#allocation2 + $0x202]]
        %v315 = vstv %s314
        %v316 = vmul.f32 %v225, %v315
        %v317 = vadd.f32 %v313, %v316
        %s318 = sld [smem:[#allocation2 + $0x203]]
        %v319 = vstv %s318
        %v320 = vmul.f32 %v227, %v319
        %v321 = vadd.f32 %v317, %v320
        %s322 = sld [smem:[#allocation5 + $0x4]]
        %v323 = vstv %s322
        %v324 = vadd.f32 %v321, %v323
        %s325 = scalar_lea.vmem %s212, 8 [#allocation7]
        %326 = vst [vmem:[%s325] sm:$0x3] %v324
        %s327 = sld [smem:[#allocation2 + $0x280]]
        %v328 = vstv %s327
        %v329 = vmul.f32 %v221, %v328
        %s330 = sld [smem:[#allocation2 + $0x281]]
        %v331 = vstv %s330
        %v332 = vmul.f32 %v223, %v331
        %v333 = vadd.f32 %v329, %v332
        %s334 = sld [smem:[#allocation2 + $0x282]]
        %v335 = vstv %s334
        %v336 = vmul.f32 %v225, %v335
        %v337 = vadd.f32 %v333, %v336
        %s338 = sld [smem:[#allocation2 + $0x283]]
        %v339 = vstv %s338
        %v340 = vmul.f32 %v227, %v339
        %v341 = vadd.f32 %v337, %v340
        %s342 = sld [smem:[#allocation5 + $0x5]]
        %v343 = vstv %s342
        %v344 = vadd.f32 %v341, %v343
        %s345 = scalar_lea.vmem %s212, 10 [#allocation7]
        %346 = vst [vmem:[%s345] sm:$0x3] %v344
        %s347 = sld [smem:[#allocation2 + $0x300]]
        %v348 = vstv %s347
        %v349 = vmul.f32 %v221, %v348
        %s350 = sld [smem:[#allocation2 + $0x301]]
        %v351 = vstv %s350
        %v352 = vmul.f32 %v223, %v351
        %v353 = vadd.f32 %v349, %v352
        %s354 = sld [smem:[#allocation2 + $0x302]]
        %v355 = vstv %s354
        %v356 = vmul.f32 %v225, %v355
        %v357 = vadd.f32 %v353, %v356
        %s358 = sld [smem:[#allocation2 + $0x303]]
        %v359 = vstv %s358
        %v360 = vmul.f32 %v227, %v359
        %v361 = vadd.f32 %v357, %v360
        %s362 = sld [smem:[#allocation5 + $0x6]]
        %v363 = vstv %s362
        %v364 = vadd.f32 %v361, %v363
        %s365 = scalar_lea.vmem %s212, 12 [#allocation7]
        %366 = vst [vmem:[%s365] sm:$0x3] %v364
        %s367 = sld [smem:[#allocation2 + $0x380]]
        %v368 = vstv %s367
        %v369 = vmul.f32 %v221, %v368
        %s370 = sld [smem:[#allocation2 + $0x381]]
        %v371 = vstv %s370
        %v372 = vmul.f32 %v223, %v371
        %v373 = vadd.f32 %v369, %v372
        %s374 = sld [smem:[#allocation2 + $0x382]]
        %v375 = vstv %s374
        %v376 = vmul.f32 %v225, %v375
        %v377 = vadd.f32 %v373, %v376
        %s378 = sld [smem:[#allocation2 + $0x383]]
        %v379 = vstv %s378
        %v380 = vmul.f32 %v227, %v379
        %v381 = vadd.f32 %v377, %v380
        %s382 = sld [smem:[#allocation5 + $0x7]]
        %v383 = vstv %s382
        %v384 = vadd.f32 %v381, %v383
        %s385 = scalar_lea.vmem %s212, 14 [#allocation7]
        %386 = vst [vmem:[%s385] sm:$0x3] %v384
        %s387 = sand.u32 %s111, 1
        %s388 = scalar_lea.sflag [#allocation3], %s387
        %s389 = sand.u32 %s111, 1
        %s390 = smul.addr %s389, 16
        %s391 = scalar_lea.vmem [#allocation7], %s390
        // Predicated region
        $region41: #{tpu_custom_call.1} parent=31 // pred_check
          %p392 = pneg %p121
        $region42: #{tpu_custom_call.1} parent=31 // pred_check_branch
          %394 = sbr.rel (%p392) target = $region44
        $region43: #{tpu_custom_call.1} parent=31 // pred_region
          %s396 = ssub.s32 256, 256
          %397 = vsyncadd %s388, %s396
          %s398 = smul.addr %s23, 8
          %s399 = sadd.s32 %s24, %s398
          %s400 = smul.addr %s399, 32
          %s401 = scalar_lea.hbm %s3, %s400
          %s402 = sshll.u32 %s391, 4
          %s403 = int_to_ptr.vmem [resolvable:$true] %s402
          %408 = dma.vmem_to_hbm [thread:$0]  %s403, 256, %s401, %s388, 32, 32, 2
        $region44: #{tpu_custom_call.1} parent=31 // pred_fallthru
          _
      $region32: #{tpu_custom_call.1} parent=5 // pred_fallthru
        _
      %p409 = scmp.le.s32.totalorder 2, %s14
      // Predicated region
      $region45: #{tpu_custom_call.1} parent=5 // pred_check
        %p410 = pneg %p409
      $region46: #{tpu_custom_call.1} parent=5 // pred_check_branch
        %412 = sbr.rel (%p410) target = $region48
      $region47: #{tpu_custom_call.1} parent=5 // pred_region
        %s413 = ssub.s32 %s14, 2
        // Predicated region
        $region49: #{tpu_custom_call.1} parent=47 // pred_check
          %p414 = pneg %p127
        $region50: #{tpu_custom_call.1} parent=47 // pred_check_branch
          %416 = sbr.rel (%p414) target = $region52
        $region51: #{tpu_custom_call.1} parent=47 // pred_region
          %s417 = sand.u32 %s112, 1
          %s418 = scalar_lea.sflag [#allocation3], %s417
          %s419 = sand.u32 %s112, 1
          %s420 = smul.addr %s419, 16
          %s421 = scalar_lea.vmem [#allocation7], %s420
          %422 = dma.done %s418, 256
        $region52: #{tpu_custom_call.1} parent=47 // pred_fallthru
          _
      $region48: #{tpu_custom_call.1} parent=5 // pred_fallthru
        _
    $region6: #{tpu_custom_call.1} parent=1 // loop_footer
      %s18 = sadd.s32 1, %s14
    $region7: #{tpu_custom_call.1} parent=1 // loop_footer_branch
      %13 = sbr.rel target = $region3
    $region8: #{tpu_custom_call.1} parent=1 // loop_exit
      _
    %423 = vsyncpa [#allocation3], 1
    %s424 = scalar_lea.sflag [#allocation3], 1
    %425 = vsyncpa %s424, 1
    %426 = vsyncpa [#allocation4], 1
    %s427 = scalar_lea.sflag [#allocation4], 1
    %428 = vsyncpa %s427, 1
    %429 = vsyncpa [#allocation6], 1

</llo_original>
